<compile_context>
chip_gen: v6e
topology: v6e:2x2x1
jax: 0.10.0
libtpu: 0.0.40
codegen_flags: <defaults>
</compile_context>

<pallas_src>
import functools

import jax
import jax.numpy as jnp
from jax import lax
from jax.experimental import pallas as pl
from jax.experimental.pallas import tpu as pltpu


def crf_block_kernel(maxlen_ref, em_ref, tags_ref, lens_ref,
                     start_ref, end_ref, trans_ref, transT_ref, out_ref,
                     *, use_mxu: bool, mxu_bf16: bool):
    """One batch block of the CRF NLL forward pass.

    Refs (tag-on-sublanes / batch-on-lanes):
      maxlen_ref : (n_blocks,) int32 SMEM  per-block max sequence length
      em_ref     : (S, T, B)   emissions (input dtype, cast per use)
      tags_ref   : (S, 1, B)   gold tags, -1 sentinel at masked positions
      lens_ref   : (1, B)      int32 sequence lengths (0 for padded rows)
      start_ref  : (T, 1)      start transition scores
      end_ref    : (T, 1)      end transition scores
      trans_ref  : (T, T)      transitions[from_tag, to_tag]
      transT_ref : (T, T)      transitions.T (for the stable matmul recursion)
      out_ref    : (1, 8, 128) per-block partial (denominator - numerator),
                   broadcast over the tile (unmasked lane-dense store);
                   the wrapper reads element [b, 0, 0].
    """
    S, T, B = em_ref.shape
    f32 = jnp.float32

    lens_row = lens_ref[...]                                   # (1, B) int32
    start_col = start_ref[...]                                 # (T, 1)
    end_col = end_ref[...]                                     # (T, 1)
    trans_m = trans_ref[...]                                   # (T, T)
    transT_m = transT_ref[...]                                 # (T, T)

    # Hoisted loop invariants (JAX does not CSE broadcasts inside loops).
    iota_t = lax.broadcasted_iota(jnp.int32, (T, B), 0)        # tag id on sublanes
    end_full = jnp.broadcast_to(end_col, (T, B))

    if use_mxu:
        # logsumexp_k(alpha[k,b] + trans[k,j]) via one MXU matmul per step:
        #   m_t[j] + m_a[b] + log(sum_k exp(trans[k,j]-m_t[j]) * exp(alpha[k,b]-m_a[b]))
        m_t = jnp.max(transT_m, axis=1, keepdims=True)         # (T, 1) = max_k trans[k, j]
        exp_tT = jnp.exp(transT_m - m_t)                       # (T, T), precomputed once
        if mxu_bf16:
            exp_tT = exp_tT.astype(jnp.bfloat16)
    else:
        # Tiny-T VPU path: explicit broadcast-add + reduce over k; avoids the
        # padded-MXU push/pop latency on the serial chain for small tag sets.
        trans_kj1 = trans_m[:, :, None]                        # (Tk, Tj, 1), hoisted

    # ------------------------ step 0 (outside the loop) ------------------------
    em0 = em_ref[0].astype(f32)                                # (T, B)
    oh0 = (iota_t == tags_ref[0]).astype(f32)                  # (T, B); 0 where masked
    is_last0 = (lens_row == 1).astype(f32)                     # (1, B)
    gold0 = oh0 * (em0 + start_col + is_last0 * end_full)      # emission + start (+ end if len==1)
    alpha0 = start_col + em0                                   # (T, B)
    count0 = jnp.zeros((T, T), f32)

    max_len = maxlen_ref[pl.program_id(0)]                     # SMEM scalar

    def step(i, carry):
        alpha, oh_prev, gold_acc, count = carry
        em_i = em_ref[i].astype(f32)                           # (T, B)
        oh_i = (iota_t == tags_ref[i]).astype(f32)             # (T, B)
        valid_i = i < lens_row                                  # (1, B) bool == mask[i]
        is_last_i = (lens_row == i + 1).astype(f32)             # (1, B)

        # ---- gold path (numerator); independent of alpha -> fills MXU/VPU slack ----
        gold_acc = gold_acc + oh_i * (em_i + is_last_i * end_full)
        # transition count[j,k] += sum_b oh_prev[j,b] * oh_i[k,b]   (contract lanes)
        count = count + lax.dot_general(
            oh_prev, oh_i, (((1,), (1,)), ((), ())),
            preferred_element_type=f32)

        # ---- forward recursion (serial critical path) ----
        if use_mxu:
            m_a = jnp.max(alpha, axis=0, keepdims=True)         # (1, B)
            p = jnp.exp(alpha - m_a)                            # (T, B)
            if mxu_bf16:
                p = p.astype(jnp.bfloat16)
            s = jnp.dot(exp_tT, p, preferred_element_type=f32)  # (T, B)
            # m_a + m_t is an upper bound (not tight) -> guard against log(0)
            new_alpha = em_i + m_t + m_a + jnp.log(jnp.maximum(s, 1e-30))
        else:
            scores = alpha[:, None, :] + trans_kj1              # (Tk, Tj, B)
            m = jnp.max(scores, axis=0)                         # (Tj, B) exact per-j max
            ssum = jnp.sum(jnp.exp(scores - m[None, :, :]), axis=0)
            new_alpha = em_i + m + jnp.log(ssum)
        alpha = jnp.where(valid_i, new_alpha, alpha)
        return alpha, oh_i, gold_acc, count

    # Serial recursion bounded by this block's max length (dynamic SMEM bound;
    # fully masked trailing steps are never executed).
    alpha, _, gold_acc, count = lax.fori_loop(
        1, max_len, step, (alpha0, oh0, gold0, count0))

    # ------------------------ combine block partials ------------------------
    def _sum11(x):
        return jnp.sum(jnp.sum(x, axis=1, keepdims=True), axis=0, keepdims=True)

    num = _sum11(gold_acc) + _sum11(count * trans_m)            # (1, 1)

    v = alpha + end_col                                          # (T, B)
    mv = jnp.max(v, axis=0, keepdims=True)                       # (1, B)
    lse = mv + jnp.log(jnp.sum(jnp.exp(v - mv), axis=0, keepdims=True))
    valid_b = (lens_row > 0).astype(f32)                         # drop padded batch rows
    denom = jnp.sum(lse * valid_b, axis=1, keepdims=True)        # (1, 1)

    partial = (denom - num).reshape(1, 1, 1)
    out_ref[...] = jnp.broadcast_to(partial, (1, 8, 128))


def crf_forward(emissions, tags, mask, start_transitions, end_transitions,
                transitions, *, use_mxu=None, mxu_bf16=False):
    """(log_denominator - log_numerator) / batch_size  (batch_first=False)."""
    S, B, T = emissions.shape
    if use_mxu is None:
        use_mxu = T >= 32          # tiny tag sets: padded MXU matmul is pure latency

    mask_b = jnp.asarray(mask, bool)
    tags_i = jnp.asarray(tags, jnp.int32)

    # Fold the mask into the tags (-1 sentinel never matches the tag iota); the
    # kernel recovers per-step validity from the integer lengths.
    tags_m = jnp.where(mask_b, tags_i, -1)
    lens = jnp.sum(mask_b.astype(jnp.int32), axis=0)             # (B,)

    # Tag-on-sublane / batch-on-lane layout.
    # TODO(synk): a production pipeline should emit emissions directly in
    # (S, T, B) layout to avoid this one extra XLA transpose of the big tensor.
    em_t = jnp.transpose(jnp.asarray(emissions), (0, 2, 1))       # (S, T, B)

    # Batch tiling: block last dim must be a multiple of 128 or the full
    # (padded) batch.  See header note for per-chip B_tile sizing.
    if B >= 128:
        b_tile = 128
    else:
        b_tile = ((B + 7) // 8) * 8
    n_blocks = (B + b_tile - 1) // b_tile
    Bp = n_blocks * b_tile
    pad = Bp - B
    if pad:
        em_t = jnp.pad(em_t, ((0, 0), (0, 0), (0, pad)))
        tags_m = jnp.pad(tags_m, ((0, 0), (0, pad)), constant_values=-1)
        lens = jnp.pad(lens, (0, pad))

    tags3 = tags_m[:, None, :]                                    # (S, 1, Bp)
    lens2 = lens[None, :]                                         # (1, Bp)
    maxlen = jnp.max(lens.reshape(n_blocks, b_tile), axis=1).astype(jnp.int32)

    start2 = jnp.asarray(start_transitions, jnp.float32).reshape(T, 1)
    end2 = jnp.asarray(end_transitions, jnp.float32).reshape(T, 1)
    trans_f = jnp.asarray(transitions, jnp.float32)               # (T, T)
    transT_f = trans_f.T                                          # (T, T)

    kernel = functools.partial(crf_block_kernel,
                               use_mxu=use_mxu, mxu_bf16=mxu_bf16)

    grid_spec = pltpu.PrefetchScalarGridSpec(
        num_scalar_prefetch=1,
        grid=(n_blocks,),
        in_specs=[
            pl.BlockSpec((S, T, b_tile), lambda b, ml: (0, 0, b)),   # emissions
            pl.BlockSpec((S, 1, b_tile), lambda b, ml: (0, 0, b)),   # tags (+sentinel)
            pl.BlockSpec((1, b_tile), lambda b, ml: (0, b)),         # lengths
            pl.BlockSpec((T, 1), lambda b, ml: (0, 0)),              # start
            pl.BlockSpec((T, 1), lambda b, ml: (0, 0)),              # end
            pl.BlockSpec((T, T), lambda b, ml: (0, 0)),              # transitions
            pl.BlockSpec((T, T), lambda b, ml: (0, 0)),              # transitions.T
        ],
        out_specs=pl.BlockSpec((1, 8, 128), lambda b, ml: (b, 0, 0)),
    )

    out = pl.pallas_call(
        kernel,
        out_shape=jax.ShapeDtypeStruct((n_blocks, 8, 128), jnp.float32),
        grid_spec=grid_spec,
        compiler_params=pltpu.CompilerParams(
            dimension_semantics=("parallel",)),
    )(maxlen, em_t, tags3, lens2, start2, end2, trans_f, transT_f)

    # Only [b, 0, 0] of each block carries data (value is broadcast in-tile).
    return jnp.sum(out[:, 0, 0]) / B


def crf_reference(emissions, tags, mask, start, end, trans):
    """Pure-JAX port of the PyTorch module for validation."""
    S, B, T = emissions.shape
    tags = jnp.asarray(tags, jnp.int32)
    maskf = jnp.asarray(mask, jnp.float32)
    emissions = jnp.asarray(emissions, jnp.float32)
    # numerator
    scores = jnp.zeros((S, B), jnp.float32)
    scores = scores.at[1:].add(trans[tags[:-1], tags[1:]])
    scores = scores + jnp.take_along_axis(emissions, tags[:, :, None], axis=2)[:, :, 0]
    num = jnp.sum(scores * maskf)
    ends = jnp.sum(jnp.asarray(mask, jnp.int32), axis=0) - 1
    num += jnp.sum(start[tags[0]])
    num += jnp.sum(end[tags[ends, jnp.arange(B)]])
    # denominator (forward algorithm)
    alpha = start + emissions[0]
    for i in range(1, S):
        sc = trans[None] + emissions[i][:, None, :] + alpha[:, :, None]
        new = jax.scipy.special.logsumexp(sc, axis=1)
        alpha = jnp.where(maskf[i][:, None] > 0.5, new, alpha)
    denom = jnp.sum(jax.scipy.special.logsumexp(alpha + end, axis=1))
    return (denom - num) / B


if __name__ == "__main__":
    key = jax.random.PRNGKey(0)
    k_em, k_tag, k_len, k_s, k_e, k_t = jax.random.split(key, 6)

    def make_inputs(ke, kt, kl, S, B, T):
        em = jax.random.normal(ke, (S, B, T), jnp.float32)
        tg = jax.random.randint(kt, (S, B), 0, T)
        lengths = jax.random.randint(kl, (B,), 2, S + 1)
        mk = jnp.arange(S)[:, None] < lengths[None, :]     # prefix masks, mask[0]=1
        return em, tg, mk

    S, B, T = 8, 4, 8
    # parameters ~ U(-0.1, 0.1), mirrors reset_parameters
    start_transitions = jax.random.uniform(k_s, (T,), jnp.float32, -0.1, 0.1)
    end_transitions = jax.random.uniform(k_e, (T,), jnp.float32, -0.1, 0.1)
    transitions = jax.random.uniform(k_t, (T, T), jnp.float32, -0.1, 0.1)

    em1, tg1, mk1 = make_inputs(k_em, k_tag, k_len, S, B, T)
    ref1 = crf_reference(em1, tg1, mk1, start_transitions, end_transitions, transitions)

    # 1) tiny-T auto path (VPU recursion), single batch block
    out1 = jax.block_until_ready(
        crf_forward(em1, tg1, mk1, start_transitions, end_transitions, transitions))
    assert jnp.allclose(out1, ref1, atol=1e-4, rtol=1e-4), (out1, ref1)

    # 2) MXU recursion path on the same inputs
    out2 = jax.block_until_ready(
        crf_forward(em1, tg1, mk1, start_transitions, end_transitions, transitions,
                    use_mxu=True))
    assert jnp.allclose(out2, ref1, atol=1e-4, rtol=1e-4), (out2, ref1)

    # 3) multi-block batch grid (2 blocks of 128 lanes + padded rows), MXU path
    k2a, k2b, k2c = jax.random.split(key, 3)
    em3, tg3, mk3 = make_inputs(k2a, k2b, k2c, 8, 200, T)
    ref3 = crf_reference(em3, tg3, mk3, start_transitions, end_transitions, transitions)
    out3 = jax.block_until_ready(
        crf_forward(em3, tg3, mk3, start_transitions, end_transitions, transitions,
                    use_mxu=True))
    assert jnp.allclose(out3, ref3, atol=1e-4, rtol=1e-4), (out3, ref3)

    # 3b) bf16 MXU operands (v6e/v7x knob), looser tolerance
    out3b = jax.block_until_ready(
        crf_forward(em3, tg3, mk3, start_transitions, end_transitions, transitions,
                    use_mxu=True, mxu_bf16=True))
    assert jnp.allclose(out3b, ref3, atol=1e-1, rtol=5e-2), (out3b, ref3)

    print("KERNEL_OK")
</pallas_src>

<mosaic_0001>
module attributes {stable_mosaic.version = 11 : i64} {
  func.func @crf_block_kernel(%arg0: i32, %arg1: memref<1xi32, #tpu.memory_space<smem>>, %arg2: memref<8x8x8xf32, #tpu.memory_space<vmem>>, %arg3: memref<8x1x8xi32, #tpu.memory_space<vmem>>, %arg4: memref<1x8xi32, #tpu.memory_space<vmem>>, %arg5: memref<8x1xf32, #tpu.memory_space<vmem>>, %arg6: memref<8x1xf32, #tpu.memory_space<vmem>>, %arg7: memref<8x8xf32, #tpu.memory_space<vmem>>, %arg8: memref<8x8xf32, #tpu.memory_space<vmem>>, %arg9: memref<1x8x128xf32, #tpu.memory_space<vmem>>) attributes {dimension_semantics = [#tpu.dimension_semantics<parallel>], iteration_bounds = array<i64: 1>, scalar_prefetch = 1 : i64, scratch_operands = 0 : i64, tpu.core_type = #tpu.core_type<tc>, window_params = [{transform_indices = @transform_0, window_bounds = array<i64: 8, 8, 8>}, {transform_indices = @transform_1, window_bounds = array<i64: 8, 1, 8>}, {transform_indices = @transform_2, window_bounds = array<i64: 1, 8>}, {pipeline_mode = #tpu.pipeline_mode<synchronous>, transform_indices = @transform_3, window_bounds = array<i64: 8, 1>}, {pipeline_mode = #tpu.pipeline_mode<synchronous>, transform_indices = @transform_4, window_bounds = array<i64: 8, 1>}, {pipeline_mode = #tpu.pipeline_mode<synchronous>, transform_indices = @transform_5, window_bounds = array<i64: 8, 8>}, {pipeline_mode = #tpu.pipeline_mode<synchronous>, transform_indices = @transform_6, window_bounds = array<i64: 8, 8>}, {transform_indices = @transform_7, window_bounds = array<i64: 1, 8, 128>}]} {
    %c0 = arith.constant 0 : index
    %c0_0 = arith.constant 0 : index
    %0 = vector.load %arg4[%c0, %c0_0] : memref<1x8xi32, #tpu.memory_space<vmem>>, vector<1x8xi32>
    %c0_1 = arith.constant 0 : index
    %c0_2 = arith.constant 0 : index
    %1 = vector.load %arg5[%c0_1, %c0_2] : memref<8x1xf32, #tpu.memory_space<vmem>>, vector<8x1xf32>
    %c0_3 = arith.constant 0 : index
    %c0_4 = arith.constant 0 : index
    %2 = vector.load %arg6[%c0_3, %c0_4] : memref<8x1xf32, #tpu.memory_space<vmem>>, vector<8x1xf32>
    %c0_5 = arith.constant 0 : index
    %c0_6 = arith.constant 0 : index
    %3 = vector.load %arg7[%c0_5, %c0_6] : memref<8x8xf32, #tpu.memory_space<vmem>>, vector<8x8xf32>
    %4 = tpu.iota {dimensions = array<i32: 0>} : vector<8x8xi32>
    %5 = vector.shape_cast %2 : vector<8x1xf32> to vector<8x1xf32>
    %6 = vector.broadcast %5 : vector<8x1xf32> to vector<8x8xf32>
    %7 = vector.shape_cast %3 : vector<8x8xf32> to vector<8x8x1xf32>
    %c0_7 = arith.constant 0 : index
    %c0_8 = arith.constant 0 : index
    %c0_9 = arith.constant 0 : index
    %8 = vector.load %arg2[%c0_7, %c0_8, %c0_9] : memref<8x8x8xf32, #tpu.memory_space<vmem>>, vector<1x8x8xf32>
    %9 = vector.shape_cast %8 : vector<1x8x8xf32> to vector<8x8xf32>
    %c0_10 = arith.constant 0 : index
    %c0_11 = arith.constant 0 : index
    %c0_12 = arith.constant 0 : index
    %10 = vector.load %arg3[%c0_10, %c0_11, %c0_12] : memref<8x1x8xi32, #tpu.memory_space<vmem>>, vector<1x1x8xi32>
    %11 = vector.shape_cast %10 : vector<1x1x8xi32> to vector<1x8xi32>
    %12 = vector.broadcast %11 : vector<1x8xi32> to vector<8x8xi32>
    %13 = arith.cmpi eq, %4, %12 : vector<8x8xi32>
    %14 = arith.extui %13 : vector<8x8xi1> to vector<8x8xi32>
    %15 = arith.sitofp %14 : vector<8x8xi32> to vector<8x8xf32>
    %c1_i32 = arith.constant 1 : i32
    %16 = vector.broadcast %c1_i32 : i32 to vector<1x8xi32>
    %17 = arith.cmpi eq, %0, %16 : vector<1x8xi32>
    %18 = arith.extui %17 : vector<1x8xi1> to vector<1x8xi32>
    %19 = arith.sitofp %18 : vector<1x8xi32> to vector<1x8xf32>
    %20 = vector.broadcast %1 : vector<8x1xf32> to vector<8x8xf32>
    %21 = arith.addf %9, %20 : vector<8x8xf32>
    %22 = vector.broadcast %19 : vector<1x8xf32> to vector<8x8xf32>
    %23 = arith.mulf %22, %6 : vector<8x8xf32>
    %24 = arith.addf %21, %23 : vector<8x8xf32>
    %25 = arith.mulf %15, %24 : vector<8x8xf32>
    %26 = vector.broadcast %1 : vector<8x1xf32> to vector<8x8xf32>
    %27 = arith.addf %26, %9 : vector<8x8xf32>
    %cst = arith.constant 0.000000e+00 : f32
    %28 = vector.broadcast %cst : f32 to vector<8x8xf32>
    %29 = arith.index_cast %arg0 : i32 to index
    %30 = memref.load %arg1[%29] : memref<1xi32, #tpu.memory_space<smem>>
    %c1_i32_13 = arith.constant 1 : i32
    %31 = arith.subi %30, %c1_i32_13 : i32
    %32 = arith.addi %c1_i32_13, %31 : i32
    %c1_i32_14 = arith.constant 1 : i32
    %33:4 = scf.for %arg10 = %c1_i32_13 to %32 step %c1_i32_14 iter_args(%arg11 = %27, %arg12 = %15, %arg13 = %25, %arg14 = %28) -> (vector<8x8xf32>, vector<8x8xf32>, vector<8x8xf32>, vector<8x8xf32>)  : i32 {
      %67 = arith.index_cast %arg10 : i32 to index
      %c0_25 = arith.constant 0 : index
      %c0_26 = arith.constant 0 : index
      %68 = vector.load %arg2[%67, %c0_25, %c0_26] : memref<8x8x8xf32, #tpu.memory_space<vmem>>, vector<1x8x8xf32>
      %69 = vector.shape_cast %68 : vector<1x8x8xf32> to vector<8x8xf32>
      %70 = arith.index_cast %arg10 : i32 to index
      %c0_27 = arith.constant 0 : index
      %c0_28 = arith.constant 0 : index
      %71 = vector.load %arg3[%70, %c0_27, %c0_28] : memref<8x1x8xi32, #tpu.memory_space<vmem>>, vector<1x1x8xi32>
      %72 = vector.shape_cast %71 : vector<1x1x8xi32> to vector<1x8xi32>
      %73 = vector.broadcast %72 : vector<1x8xi32> to vector<8x8xi32>
      %74 = arith.cmpi eq, %4, %73 : vector<8x8xi32>
      %75 = arith.extui %74 : vector<8x8xi1> to vector<8x8xi32>
      %76 = arith.sitofp %75 : vector<8x8xi32> to vector<8x8xf32>
      %77 = vector.broadcast %arg10 : i32 to vector<1x8xi32>
      %78 = arith.cmpi slt, %77, %0 : vector<1x8xi32>
      %c1_i32_29 = arith.constant 1 : i32
      %79 = arith.addi %arg10, %c1_i32_29 : i32
      %80 = vector.broadcast %79 : i32 to vector<1x8xi32>
      %81 = arith.cmpi eq, %0, %80 : vector<1x8xi32>
      %82 = arith.extui %81 : vector<1x8xi1> to vector<1x8xi32>
      %83 = arith.sitofp %82 : vector<1x8xi32> to vector<1x8xf32>
      %84 = vector.broadcast %83 : vector<1x8xf32> to vector<8x8xf32>
      %85 = arith.mulf %84, %6 : vector<8x8xf32>
      %86 = arith.addf %69, %85 : vector<8x8xf32>
      %87 = arith.mulf %76, %86 : vector<8x8xf32>
      %88 = arith.addf %arg13, %87 : vector<8x8xf32>
      %cst_30 = arith.constant dense<0.000000e+00> : vector<8x8xf32>
      %89 = tpu.matmul %arg12, %76, %cst_30 {dimension_numbers = #tpu.dot_dimension_numbers<[1], [1], [0], [0], [0, 0, 1, 0], [], []>} : vector<8x8xf32>, vector<8x8xf32>, vector<8x8xf32> -> vector<8x8xf32>
      %90 = arith.addf %arg14, %89 : vector<8x8xf32>
      %91 = vector.shape_cast %arg11 : vector<8x8xf32> to vector<8x1x8xf32>
      %92 = vector.broadcast %91 : vector<8x1x8xf32> to vector<8x8x8xf32>
      %93 = vector.broadcast %7 : vector<8x8x1xf32> to vector<8x8x8xf32>
      %94 = arith.addf %92, %93 : vector<8x8x8xf32>
      %cst_31 = arith.constant dense<0xFF800000> : vector<8x8xf32>
      %95 = vector.multi_reduction <maximumf>, %94, %cst_31 [0] : vector<8x8x8xf32> to vector<8x8xf32>
      %96 = vector.shape_cast %95 : vector<8x8xf32> to vector<1x8x8xf32>
      %97 = vector.broadcast %96 : vector<1x8x8xf32> to vector<8x8x8xf32>
      %98 = arith.subf %94, %97 : vector<8x8x8xf32>
      %99 = math.exp %98 : vector<8x8x8xf32>
      %cst_32 = arith.constant dense<0.000000e+00> : vector<8x8xf32>
      %100 = vector.multi_reduction <add>, %99, %cst_32 [0] : vector<8x8x8xf32> to vector<8x8xf32>
      %101 = arith.addf %69, %95 : vector<8x8xf32>
      %102 = math.log %100 : vector<8x8xf32>
      %103 = arith.addf %101, %102 : vector<8x8xf32>
      %104 = vector.shape_cast %78 : vector<1x8xi1> to vector<1x8xi1>
      %105 = vector.broadcast %104 : vector<1x8xi1> to vector<8x8xi1>
      %106 = arith.select %105, %103, %arg11 : vector<8x8xi1>, vector<8x8xf32>
      scf.yield %106, %76, %88, %90 : vector<8x8xf32>, vector<8x8xf32>, vector<8x8xf32>, vector<8x8xf32>
    }
    %cst_15 = arith.constant dense<0.000000e+00> : vector<8xf32>
    %34 = vector.multi_reduction <add>, %33#2, %cst_15 [1] : vector<8x8xf32> to vector<8xf32>
    %35 = vector.shape_cast %34 : vector<8xf32> to vector<8x1xf32>
    %cst_16 = arith.constant dense<0.000000e+00> : vector<1xf32>
    %36 = vector.multi_reduction <add>, %35, %cst_16 [0] : vector<8x1xf32> to vector<1xf32>
    %37 = vector.shape_cast %36 : vector<1xf32> to vector<1x1xf32>
    %38 = arith.mulf %33#3, %3 : vector<8x8xf32>
    %cst_17 = arith.constant dense<0.000000e+00> : vector<8xf32>
    %39 = vector.multi_reduction <add>, %38, %cst_17 [1] : vector<8x8xf32> to vector<8xf32>
    %40 = vector.shape_cast %39 : vector<8xf32> to vector<8x1xf32>
    %cst_18 = arith.constant dense<0.000000e+00> : vector<1xf32>
    %41 = vector.multi_reduction <add>, %40, %cst_18 [0] : vector<8x1xf32> to vector<1xf32>
    %42 = vector.shape_cast %41 : vector<1xf32> to vector<1x1xf32>
    %43 = arith.addf %37, %42 : vector<1x1xf32>
    %44 = vector.broadcast %2 : vector<8x1xf32> to vector<8x8xf32>
    %45 = arith.addf %33#0, %44 : vector<8x8xf32>
    %cst_19 = arith.constant dense<0xFF800000> : vector<8xf32>
    %46 = vector.multi_reduction <maximumf>, %45, %cst_19 [0] : vector<8x8xf32> to vector<8xf32>
    %47 = vector.shape_cast %46 : vector<8xf32> to vector<1x8xf32>
    %48 = vector.broadcast %47 : vector<1x8xf32> to vector<8x8xf32>
    %49 = arith.subf %45, %48 : vector<8x8xf32>
    %50 = math.exp %49 : vector<8x8xf32>
    %cst_20 = arith.constant dense<0.000000e+00> : vector<8xf32>
    %51 = vector.multi_reduction <add>, %50, %cst_20 [0] : vector<8x8xf32> to vector<8xf32>
    %52 = vector.shape_cast %51 : vector<8xf32> to vector<1x8xf32>
    %53 = math.log %52 : vector<1x8xf32>
    %54 = arith.addf %47, %53 : vector<1x8xf32>
    %c0_i32 = arith.constant 0 : i32
    %55 = vector.broadcast %c0_i32 : i32 to vector<1x8xi32>
    %56 = arith.cmpi sgt, %0, %55 : vector<1x8xi32>
    %57 = arith.extui %56 : vector<1x8xi1> to vector<1x8xi32>
    %58 = arith.sitofp %57 : vector<1x8xi32> to vector<1x8xf32>
    %59 = arith.mulf %54, %58 : vector<1x8xf32>
    %cst_21 = arith.constant dense<0.000000e+00> : vector<1xf32>
    %60 = vector.multi_reduction <add>, %59, %cst_21 [1] : vector<1x8xf32> to vector<1xf32>
    %61 = vector.shape_cast %60 : vector<1xf32> to vector<1x1xf32>
    %62 = arith.subf %61, %43 : vector<1x1xf32>
    %63 = vector.shape_cast %62 : vector<1x1xf32> to vector<1x1x1xf32>
    %64 = vector.shape_cast %63 : vector<1x1x1xf32> to vector<1x1x1xf32>
    %65 = vector.broadcast %64 : vector<1x1x1xf32> to vector<1x8x128xf32>
    %c0_22 = arith.constant 0 : index
    %c0_23 = arith.constant 0 : index
    %c0_24 = arith.constant 0 : index
    %66 = vector.load %arg9[%c0_22, %c0_23, %c0_24] : memref<1x8x128xf32, #tpu.memory_space<vmem>>, vector<1x8x128xf32>
    tpu.vector_store %arg9[%c0_22, %c0_23, %c0_24], %65 {strides = array<i32>} : memref<1x8x128xf32, #tpu.memory_space<vmem>>, vector<1x8x128xf32>,
    return
  }
  func.func @transform_0(%arg0: i32, %arg1: memref<1xi32, #tpu.memory_space<smem>>) -> (i32, i32, i32) {
    %c0_i32 = arith.constant 0 : i32
    %c0_i32_0 = arith.constant 0 : i32
    %c0_i32_1 = arith.constant 0 : i32
    return %c0_i32, %c0_i32_0, %arg0 : i32, i32, i32
  }
  func.func @transform_1(%arg0: i32, %arg1: memref<1xi32, #tpu.memory_space<smem>>) -> (i32, i32, i32) {
    %c0_i32 = arith.constant 0 : i32
    %c0_i32_0 = arith.constant 0 : i32
    %c0_i32_1 = arith.constant 0 : i32
    return %c0_i32, %c0_i32_0, %arg0 : i32, i32, i32
  }
  func.func @transform_2(%arg0: i32, %arg1: memref<1xi32, #tpu.memory_space<smem>>) -> (i32, i32) {
    %c0_i32 = arith.constant 0 : i32
    %c0_i32_0 = arith.constant 0 : i32
    return %c0_i32, %arg0 : i32, i32
  }
  func.func @transform_3(%arg0: i32, %arg1: memref<1xi32, #tpu.memory_space<smem>>) -> (i32, i32) {
    %c0_i32 = arith.constant 0 : i32
    %c0_i32_0 = arith.constant 0 : i32
    %c0_i32_1 = arith.constant 0 : i32
    return %c0_i32, %c0_i32_0 : i32, i32
  }
  func.func @transform_4(%arg0: i32, %arg1: memref<1xi32, #tpu.memory_space<smem>>) -> (i32, i32) {
    %c0_i32 = arith.constant 0 : i32
    %c0_i32_0 = arith.constant 0 : i32
    %c0_i32_1 = arith.constant 0 : i32
    return %c0_i32, %c0_i32_0 : i32, i32
  }
  func.func @transform_5(%arg0: i32, %arg1: memref<1xi32, #tpu.memory_space<smem>>) -> (i32, i32) {
    %c0_i32 = arith.constant 0 : i32
    %c0_i32_0 = arith.constant 0 : i32
    %c0_i32_1 = arith.constant 0 : i32
    return %c0_i32, %c0_i32_0 : i32, i32
  }
  func.func @transform_6(%arg0: i32, %arg1: memref<1xi32, #tpu.memory_space<smem>>) -> (i32, i32) {
    %c0_i32 = arith.constant 0 : i32
    %c0_i32_0 = arith.constant 0 : i32
    %c0_i32_1 = arith.constant 0 : i32
    return %c0_i32, %c0_i32_0 : i32, i32
  }
  func.func @transform_7(%arg0: i32, %arg1: memref<1xi32, #tpu.memory_space<smem>>) -> (i32, i32, i32) {
    %c0_i32 = arith.constant 0 : i32
    %c0_i32_0 = arith.constant 0 : i32
    %c0_i32_1 = arith.constant 0 : i32
    return %arg0, %c0_i32, %c0_i32_0 : i32, i32, i32
  }
}

</mosaic_0001>

<llo_original>
// kernel: tpu_custom_call.1
$region0: #{tpu_custom_call.1}
  #allocation0 [shape = 'u32[]', space=smem, size = 0x4, offset = 0x4, fixed_abs, tag = 'smem constant byte address 0x4 - core index']
  #allocation1 [shape = 'u32[144,128]{1,0:T(1,128)}', space=vmem, size = 0x12000, scoped, tag = 'internal scratch']
  #allocation2 [shape = 's32[1]{0}', space=sflag, size = 0x4, scoped, tag = 'scoped memory for tpu_custom_call.1']
  #allocation3 [shape = 's32[1]{0:T(128)S(6)}', space=smem, size = 0x200, scoped, tag = 'prefetched SMEM operand 0']
  %s0 = inlined_call_operand.<no memory space> [shape: s32[1], index: 0, kind: input, shape index: {}]
  %s1 = inlined_call_operand.hbm [shape: f32[8,8,8], index: 1, kind: input, shape index: {}]
  %s2 = inlined_call_operand.vmem [shape: s32[8,1,8], index: 2, kind: input, shape index: {}]
  %s3 = inlined_call_operand.vmem [shape: s32[1,8], index: 3, kind: input, shape index: {}]
  %s4 = inlined_call_operand.vmem [shape: f32[8,1], index: 4, kind: input, shape index: {}]
  %s5 = inlined_call_operand.vmem [shape: f32[8,1], index: 5, kind: input, shape index: {}]
  %s6 = inlined_call_operand.vmem [shape: f32[8,8], index: 6, kind: input, shape index: {}]
  %s7 = inlined_call_operand.vmem [shape: f32[8,8], index: 7, kind: input, shape index: {}]
  %s8 = inlined_call_operand.hbm [shape: f32[1,8,128], index: 8, kind: output, shape index: {}]
  %s9 = sld [smem:[#allocation0]]
  $region49: #{tpu_custom_call.1} parent=0
    _
  %s11 = ssub.s32 1, %s9
  %s12 = scalar_select 0, %s11, %s9
  %13 = sst [smem:[#allocation3]] %s0
  $region1: #{tpu_custom_call.1} parent=0
    #allocation4 [shape = 'u8[32768]{0}', space=vmem, size = 0x8000, scoped, tag = 'input window, operand 1, single buffered']
    #allocation5 [shape = 's32[1]{0}', space=sflag, size = 0x4, scoped, tag = 'scoped memory for tpu_custom_call.1']
    #allocation6 [shape = 's32[1]{0}', space=sflag, size = 0x4, scoped, tag = 'scoped memory for tpu_custom_call.1']
    #allocation7 [shape = 'u8[4096]{0}', space=vmem, size = 0x1000, scoped, tag = 'output window, operand 0, single buffered']
    %14 = vsyncpa [#allocation5], 0
    %15 = vsyncpa [#allocation6], 0
    // Predicated region
    $region2: #{tpu_custom_call.1} parent=1 // pred_check
      _
    $region3: #{tpu_custom_call.1} parent=1 // pred_check_branch
      %17 = sbr.rel (0) target = $region5
    $region4: #{tpu_custom_call.1} parent=1 // pred_region
      %s19 = ssub.s32 1024, 1024
      %20 = vsyncadd [#allocation5], %s19
      %s21 = sshll.u32 [#allocation4], 4
      %s22 = int_to_ptr.vmem [resolvable:$true] %s21
      %27 = dma.hbm_to_vmem [thread:$0]  %s1, 1024, %s22, [#allocation5], 128, 128, 8
    $region5: #{tpu_custom_call.1} parent=1 // pred_fallthru
      _
    // Predicated region
    $region6: #{tpu_custom_call.1} parent=1 // pred_check
      _
    $region7: #{tpu_custom_call.1} parent=1 // pred_check_branch
      %29 = sbr.rel (0) target = $region9
    $region8: #{tpu_custom_call.1} parent=1 // pred_region
      _
    $region9: #{tpu_custom_call.1} parent=1 // pred_fallthru
      _
    // Predicated region
    $region10: #{tpu_custom_call.1} parent=1 // pred_check
      _
    $region11: #{tpu_custom_call.1} parent=1 // pred_check_branch
      %31 = sbr.rel (0) target = $region13
    $region12: #{tpu_custom_call.1} parent=1 // pred_region
      _
    $region13: #{tpu_custom_call.1} parent=1 // pred_fallthru
      _
    // Predicated region
    $region14: #{tpu_custom_call.1} parent=1 // pred_check
      _
    $region15: #{tpu_custom_call.1} parent=1 // pred_check_branch
      %33 = sbr.rel (0) target = $region17
    $region16: #{tpu_custom_call.1} parent=1 // pred_region
      _
    $region17: #{tpu_custom_call.1} parent=1 // pred_fallthru
      _
    // Predicated region
    $region18: #{tpu_custom_call.1} parent=1 // pred_check
      _
    $region19: #{tpu_custom_call.1} parent=1 // pred_check_branch
      %35 = sbr.rel (0) target = $region21
    $region20: #{tpu_custom_call.1} parent=1 // pred_region
      _
    $region21: #{tpu_custom_call.1} parent=1 // pred_fallthru
      _
    // Predicated region
    $region22: #{tpu_custom_call.1} parent=1 // pred_check
      _
    $region23: #{tpu_custom_call.1} parent=1 // pred_check_branch
      %37 = sbr.rel (0) target = $region25
    $region24: #{tpu_custom_call.1} parent=1 // pred_region
      _
    $region25: #{tpu_custom_call.1} parent=1 // pred_fallthru
      _
    // Predicated region
    $region26: #{tpu_custom_call.1} parent=1 // pred_check
      _
    $region27: #{tpu_custom_call.1} parent=1 // pred_check_branch
      %39 = sbr.rel (0) target = $region29
    $region28: #{tpu_custom_call.1} parent=1 // pred_region
      _
    $region29: #{tpu_custom_call.1} parent=1 // pred_fallthru
      _
    // Predicated region
    $region30: #{tpu_custom_call.1} parent=1 // pred_check
      _
    $region31: #{tpu_custom_call.1} parent=1 // pred_check_branch
      %41 = sbr.rel (0) target = $region33
    $region32: #{tpu_custom_call.1} parent=1 // pred_region
      %42 = dma.done [#allocation5], 1024
    $region33: #{tpu_custom_call.1} parent=1 // pred_fallthru
      _
    %v43 = vld [vmem:[%s3] sm:$0x1]
    %v44 = vld [vmem:[%s4] sm:$0xff]
    %v45 = vld [vmem:[%s5] sm:$0xff]
    %v46 = vld [vmem:[%s6] sm:$0xff]
    %v47 = vlaneseq
    %v48 = vshrl.u32 %v47, 7
    %50 = vset.pattern.permute.xlu0 0
    %51 = vperm.xlu0 %50, %v45
    %v52 = vpop.permute.xlu0 %51
    %v54 = vlaneseq
    %v55 = vshrl.u32 %v54, 7
    %v56 = vsub.s32 0, %v55
    %v57 = vrot.slane %v46, %v56
    %59 = vbcast.lane.b32.xlu0 %v57, 256
    %v60 = vpop.permute.xlu0 %59
    %v61 = vlaneseq
    %v62 = vshrl.u32 %v61, 7
    %v63 = vsub.s32 1, %v62
    %v64 = vrot.slane %v46, %v63
    %66 = vbcast.lane.b32.xlu0 %v64, 256
    %v67 = vpop.permute.xlu0 %66
    %v68 = vlaneseq
    %v69 = vshrl.u32 %v68, 7
    %v70 = vsub.s32 2, %v69
    %v71 = vrot.slane %v46, %v70
    %73 = vbcast.lane.b32.xlu0 %v71, 256
    %v74 = vpop.permute.xlu0 %73
    %v75 = vlaneseq
    %v76 = vshrl.u32 %v75, 7
    %v77 = vsub.s32 3, %v76
    %v78 = vrot.slane %v46, %v77
    %80 = vbcast.lane.b32.xlu0 %v78, 256
    %v81 = vpop.permute.xlu0 %80
    %v82 = vlaneseq
    %v83 = vshrl.u32 %v82, 7
    %v84 = vsub.s32 4, %v83
    %v85 = vrot.slane %v46, %v84
    %87 = vbcast.lane.b32.xlu0 %v85, 256
    %v88 = vpop.permute.xlu0 %87
    %v89 = vlaneseq
    %v90 = vshrl.u32 %v89, 7
    %v91 = vsub.s32 5, %v90
    %v92 = vrot.slane %v46, %v91
    %94 = vbcast.lane.b32.xlu0 %v92, 256
    %v95 = vpop.permute.xlu0 %94
    %v96 = vlaneseq
    %v97 = vshrl.u32 %v96, 7
    %v98 = vsub.s32 6, %v97
    %v99 = vrot.slane %v46, %v98
    %101 = vbcast.lane.b32.xlu0 %v99, 256
    %v102 = vpop.permute.xlu0 %101
    %v103 = vlaneseq
    %v104 = vshrl.u32 %v103, 7
    %v105 = vsub.s32 7, %v104
    %v106 = vrot.slane %v46, %v105
    %108 = vbcast.lane.b32.xlu0 %v106, 256
    %v109 = vpop.permute.xlu0 %108
    %v110 = vld [vmem:[#allocation4] sm:$0xff]
    %v111 = vld [vmem:[%s2] sm:$0x1]
    %v112 = vlaneseq
    %v113 = vshrl.u32 %v112, 7
    %v114 = vsub.s32 0, %v113
    %v115 = vrot.slane %v111, %v114
    %vm116 = vcmp.eq.s32.totalorder %v48, %v115
    %v117 = vsel %vm116, 1, 0
    %v118 = vcvt.s32.f32 %v117
    %vm119 = vcmp.eq.s32.totalorder %v43, 1
    %v120 = vsel %vm119, 1, 0
    %v121 = vcvt.s32.f32 %v120
    %123 = vset.pattern.permute.xlu0 0
    %124 = vperm.xlu0 %123, %v44
    %v125 = vpop.permute.xlu0 %124
    %v127 = vadd.f32 %v110, %v125
    %v129 = vlaneseq
    %v130 = vshrl.u32 %v129, 7
    %v131 = vsub.s32 0, %v130
    %v132 = vrot.slane %v121, %v131
    %v134 = vmul.f32 %v132, %v52
    %v135 = vadd.f32 %v127, %v134
    %v136 = vmul.f32 %v118, %v135
    %s137 = sld [smem:[#allocation3]]
    // While loop
    $region34: #{tpu_custom_call.1} parent=1 // loop_pre_header
      _
    $region35: #{tpu_custom_call.1} parent=1 // loop_header
      %s139 = sphi 1, %s141
      %p140 = scmp.ge.s32.totalorder %s139, %s137
      %v144 = vphi %v127, %v417
      %v145 = vphi %v118, %v159
      %v146 = vphi %v136, %v176
      %v147 = vphi 0.0, %v254
    $region36: #{tpu_custom_call.1} parent=1 // loop_header_branch
      %143 = sbr.rel (%p140) target = $region40
    $region37: #{tpu_custom_call.1} parent=1 // loop_body
      %s148 = smul.u32 %s139, 8
      %s149 = scalar_lea.vmem [#allocation4], %s148
      %v150 = vld [vmem:[%s149] sm:$0xff]
      %s151 = scalar_lea.vmem %s2, %s139
      %v152 = vld [vmem:[%s151] sm:$0x1]
      %v153 = vlaneseq
      %v154 = vshrl.u32 %v153, 7
      %v155 = vsub.s32 0, %v154
      %v156 = vrot.slane %v152, %v155
      %vm157 = vcmp.eq.s32.totalorder %v48, %v156
      %v158 = vsel %vm157, 1, 0
      %v159 = vcvt.s32.f32 %v158
      %v160 = vstv %s139
      %vm161 = vcmp.lt.s32.totalorder %v160, %v43
      %s162 = sadd.s32 %s139, 1
      %v163 = vstv %s162
      %vm164 = vcmp.eq.s32.totalorder %v43, %v163
      %v165 = vsel %vm164, 1, 0
      %v166 = vcvt.s32.f32 %v165
      %v168 = vlaneseq
      %v169 = vshrl.u32 %v168, 7
      %v170 = vsub.s32 0, %v169
      %v171 = vrot.slane %v166, %v170
      %v173 = vmul.f32 %v171, %v52
      %v174 = vadd.f32 %v150, %v173
      %v175 = vmul.f32 %v159, %v174
      %v176 = vadd.f32 %v146, %v175
      %vm177 = vcmask 64512
      %v179 = vsel %vm177, %v145, 0
      %v182 = vsel %vm177, %v159, 0
      %184 = vmatprep.subr.mxu0 0.0
      %185 = vmatpush1.xpose.msra.mxu0 0.0
      %186 = vmatprep.subr.mxu0 0.0
      %187 = vmatpush1.xpose.msra.mxu0 0.0
      %188 = vmatprep.subr.mxu0 0.0
      %189 = vmatpush1.xpose.msra.mxu0 0.0
      %190 = vmatprep.subr.mxu0 0.0
      %191 = vmatpush1.xpose.msra.mxu0 0.0
      %192 = vmatprep.subr.mxu0 0.0
      %193 = vmatpush1.xpose.msra.mxu0 0.0
      %194 = vmatprep.subr.mxu0 0.0
      %195 = vmatpush1.xpose.msra.mxu0 0.0
      %196 = vmatprep.subr.mxu0 0.0
      %197 = vmatpush1.xpose.msra.mxu0 0.0
      %198 = vmatprep.subr.mxu0 0.0
      %199 = vmatpush1.xpose.msra.mxu0 0.0
      %200 = vmatprep.subr.mxu0 0.0
      %201 = vmatpush1.xpose.msra.mxu0 0.0
      %202 = vmatprep.subr.mxu0 0.0
      %203 = vmatpush1.xpose.msra.mxu0 0.0
      %204 = vmatprep.subr.mxu0 0.0
      %205 = vmatpush1.xpose.msra.mxu0 0.0
      %206 = vmatprep.subr.mxu0 0.0
      %207 = vmatpush1.xpose.msra.mxu0 0.0
      %208 = vmatprep.subr.mxu0 0.0
      %209 = vmatpush1.xpose.msra.mxu0 0.0
      %210 = vmatprep.subr.mxu0 0.0
      %211 = vmatpush1.xpose.msra.mxu0 0.0
      %212 = vmatprep.subr.mxu0 0.0
      %213 = vmatpush1.xpose.msra.mxu0 0.0
      %214 = vmatprep.subr.mxu0 0.0
      %215 = vmatpush1.xpose.msra.mxu0 %v182
      %216 = vmatprep.subr.mxu0 0.0
      %217 = vmatpush2.xpose.msra.mxu0 0.0
      %218 = vmatprep.subr.mxu0 0.0
      %219 = vmatpush2.xpose.msra.mxu0 0.0
      %220 = vmatprep.subr.mxu0 0.0
      %221 = vmatpush2.xpose.msra.mxu0 0.0
      %222 = vmatprep.subr.mxu0 0.0
      %223 = vmatpush2.xpose.msra.mxu0 0.0
      %224 = vmatprep.subr.mxu0 0.0
      %225 = vmatpush2.xpose.msra.mxu0 0.0
      %226 = vmatprep.subr.mxu0 0.0
      %227 = vmatpush2.xpose.msra.mxu0 0.0
      %228 = vmatprep.subr.mxu0 0.0
      %229 = vmatpush2.xpose.msra.mxu0 0.0
      %230 = vmatprep.subr.mxu0 0.0
      %231 = vmatpush2.xpose.msra.mxu0 0.0
      %232 = vmatprep.subr.mxu0 0.0
      %233 = vmatpush2.xpose.msra.mxu0 0.0
      %234 = vmatprep.subr.mxu0 0.0
      %235 = vmatpush2.xpose.msra.mxu0 0.0
      %236 = vmatprep.subr.mxu0 0.0
      %237 = vmatpush2.xpose.msra.mxu0 0.0
      %238 = vmatprep.subr.mxu0 0.0
      %239 = vmatpush2.xpose.msra.mxu0 0.0
      %240 = vmatprep.subr.mxu0 0.0
      %241 = vmatpush2.xpose.msra.mxu0 0.0
      %242 = vmatprep.subr.mxu0 0.0
      %243 = vmatpush2.xpose.msra.mxu0 0.0
      %244 = vmatprep.subr.mxu0 0.0
      %245 = vmatpush2.xpose.msra.mxu0 0.0
      %246 = vmatprep.subr.mxu0 0.0
      %247 = vmatpush2.xpose.msra.mxu0 0.0
      %248 = vmatprep.mubr.f32.mxu0 0.0
      %249 = vmatmul.mubr.f32.gmra.mxu0 %v179
      %v250 = vpop.f32.mrf.mxu0
      %v251 = vadd.f32 0.0, %v250
      %v252 = vpop.f32.mrf.mxu0
      %253 = vdwg.mxu0
      %v254 = vadd.f32 %v147, %v251
      %v256 = vcombine.high %v144, %v144
      %v258 = vunpack.c.l.s4 1966171168
      %v259 = vunpack.c.0.s8 %v258
      %v260 = vlaneseq
      %v261 = vshrl.u32 %v260, 7
      %v262 = vsub.s32 %v259, %v261
      %v263 = vrot.slane %v144, %v262
      %v265 = vunpack.c.l.s4 1966171168
      %v266 = vunpack.c.0.s8 %v265
      %v267 = vlaneseq
      %v268 = vshrl.u32 %v267, 7
      %v269 = vsub.s32 %v266, %v268
      %v270 = vrot.slane %v256, %v269
      %v271 = vcombine.high %v263, %v263
      %v272 = vcombine.high %v270, %v270
      %v274 = vunpack.c.l.s4 1966171168
      %v275 = vunpack.c.0.s8 %v274
      %v276 = vlaneseq
      %v277 = vshrl.u32 %v276, 7
      %v278 = vsub.s32 %v275, %v277
      %v279 = vrot.slane %v263, %v278
      %v281 = vunpack.c.l.s4 1966171168
      %v282 = vunpack.c.0.s8 %v281
      %v283 = vlaneseq
      %v284 = vshrl.u32 %v283, 7
      %v285 = vsub.s32 %v282, %v284
      %v286 = vrot.slane %v270, %v285
      %v288 = vunpack.c.l.s4 1966171168
      %v289 = vunpack.c.0.s8 %v288
      %v290 = vlaneseq
      %v291 = vshrl.u32 %v290, 7
      %v292 = vsub.s32 %v289, %v291
      %v293 = vrot.slane %v271, %v292
      %v295 = vunpack.c.l.s4 1966171168
      %v296 = vunpack.c.0.s8 %v295
      %v297 = vlaneseq
      %v298 = vshrl.u32 %v297, 7
      %v299 = vsub.s32 %v296, %v298
      %v300 = vrot.slane %v272, %v299
      %v301 = vcombine.high %v279, %v279
      %v302 = vcombine.high %v286, %v286
      %v303 = vcombine.high %v293, %v293
      %v304 = vcombine.high %v300, %v300
      %v305 = vlaneseq
      %v306 = vshrl.u32 %v305, 7
      %v307 = vsub.s32 0, %v306
      %v308 = vrot.slane %v279, %v307
      %v309 = vlaneseq
      %v310 = vshrl.u32 %v309, 7
      %v311 = vsub.s32 0, %v310
      %v312 = vrot.slane %v293, %v311
      %v313 = vlaneseq
      %v314 = vshrl.u32 %v313, 7
      %v315 = vsub.s32 0, %v314
      %v316 = vrot.slane %v301, %v315
      %v317 = vlaneseq
      %v318 = vshrl.u32 %v317, 7
      %v319 = vsub.s32 0, %v318
      %v320 = vrot.slane %v303, %v319
      %v321 = vlaneseq
      %v322 = vshrl.u32 %v321, 7
      %v323 = vsub.s32 0, %v322
      %v324 = vrot.slane %v286, %v323
      %v325 = vlaneseq
      %v326 = vshrl.u32 %v325, 7
      %v327 = vsub.s32 0, %v326
      %v328 = vrot.slane %v300, %v327
      %v329 = vlaneseq
      %v330 = vshrl.u32 %v329, 7
      %v331 = vsub.s32 0, %v330
      %v332 = vrot.slane %v302, %v331
      %v333 = vlaneseq
      %v334 = vshrl.u32 %v333, 7
      %v335 = vsub.s32 0, %v334
      %v336 = vrot.slane %v304, %v335
      %v345 = vadd.f32 %v308, %v60
      %v346 = vadd.f32 %v312, %v67
      %v347 = vadd.f32 %v316, %v74
      %v348 = vadd.f32 %v320, %v81
      %v349 = vadd.f32 %v324, %v88
      %v350 = vadd.f32 %v328, %v95
      %v351 = vadd.f32 %v332, %v102
      %v352 = vadd.f32 %v336, %v109
      %v353 = vsel %vm177, %v345, -inf
      %v354 = vsel %vm177, %v346, -inf
      %v355 = vsel %vm177, %v347, -inf
      %v356 = vsel %vm177, %v348, -inf
      %v357 = vsel %vm177, %v349, -inf
      %v358 = vmax.f32 %v353, %v357
      %v359 = vsel %vm177, %v350, -inf
      %v360 = vmax.f32 %v354, %v359
      %v361 = vsel %vm177, %v351, -inf
      %v362 = vmax.f32 %v355, %v361
      %v363 = vsel %vm177, %v352, -inf
      %v364 = vmax.f32 %v356, %v363
      %v365 = vmax.f32 %v358, %v360
      %v366 = vmax.f32 %v362, %v364
      %v367 = vmax.f32 %v365, %v366
      %v368 = vsub.f32 %v345, %v367
      %v369 = vsub.f32 %v346, %v367
      %v370 = vsub.f32 %v347, %v367
      %v371 = vsub.f32 %v348, %v367
      %v372 = vsub.f32 %v349, %v367
      %v373 = vsub.f32 %v350, %v367
      %v374 = vsub.f32 %v351, %v367
      %v375 = vsub.f32 %v352, %v367
      %v376 = vmul.f32 %v368, 1.442695
      %v377 = vpow.pop %v376
      %v378 = vmul.f32 %v369, 1.442695
      %v379 = vpow.pop %v378
      %v380 = vmul.f32 %v370, 1.442695
      %v381 = vpow.pop %v380
      %v382 = vmul.f32 %v371, 1.442695
      %v383 = vpow.pop %v382
      %v384 = vmul.f32 %v372, 1.442695
      %v385 = vpow.pop %v384
      %v386 = vmul.f32 %v373, 1.442695
      %v387 = vpow.pop %v386
      %v388 = vmul.f32 %v374, 1.442695
      %v389 = vpow.pop %v388
      %v390 = vmul.f32 %v375, 1.442695
      %v391 = vpow.pop %v390
      %v392 = vsel %vm177, %v377, 0.0
      %v393 = vsel %vm177, %v379, 0.0
      %v394 = vadd.f32 %v392, %v393
      %v395 = vsel %vm177, %v381, 0.0
      %v396 = vadd.f32 %v394, %v395
      %v397 = vsel %vm177, %v383, 0.0
      %v398 = vadd.f32 %v396, %v397
      %v399 = vsel %vm177, %v385, 0.0
      %v400 = vadd.f32 %v398, %v399
      %v401 = vsel %vm177, %v387, 0.0
      %v402 = vadd.f32 %v400, %v401
      %v403 = vsel %vm177, %v389, 0.0
      %v404 = vadd.f32 %v402, %v403
      %v405 = vsel %vm177, %v391, 0.0
      %v406 = vadd.f32 %v404, %v405
      %v407 = vadd.f32 %v150, %v367
      %v408 = vlog2.pop %v406
      %v409 = vmul.f32 %v408, 0.6931472
      %v410 = vadd.f32 %v407, %v409
      %v411 = vsel %vm161, 1, 0
      %v412 = vlaneseq
      %v413 = vshrl.u32 %v412, 7
      %v414 = vsub.s32 0, %v413
      %v415 = vrot.slane %v411, %v414
      %vm416 = vcmp.eq.s32.totalorder %v415, 1
      %v417 = vsel %vm416, %v410, %v144
    $region38: #{tpu_custom_call.1} parent=1 // loop_footer
      %s141 = sadd.s32 %s139, 1
    $region39: #{tpu_custom_call.1} parent=1 // loop_footer_branch
      %138 = sbr.rel target = $region35
    $region40: #{tpu_custom_call.1} parent=1 // loop_exit
      _
    %vm418 = vcmask 64512
    %v419 = vsel %vm418, %v146, 0.0
    %420 = vadd.xlane.f32.xlu0 %v419
    %v421 = vpop.xlane.xlu0 %420
    %v422 = vrot.slane %v421, 4
    %v423 = vadd.f32 %v421, %v422
    %v424 = vrot.slane %v423, 2
    %v425 = vadd.f32 %v423, %v424
    %v426 = vrot.slane %v425, 1
    %v427 = vadd.f32 %v425, %v426
    %v428 = vmul.f32 %v147, %v46
    %v429 = vsel %vm418, %v428, 0.0
    %430 = vadd.xlane.f32.xlu0 %v429
    %v431 = vpop.xlane.xlu0 %430
    %v432 = vrot.slane %v431, 4
    %v433 = vadd.f32 %v431, %v432
    %v434 = vrot.slane %v433, 2
    %v435 = vadd.f32 %v433, %v434
    %v436 = vrot.slane %v435, 1
    %v437 = vadd.f32 %v435, %v436
    %v438 = vadd.f32 %v427, %v437
    %v439 = vadd.f32 %v144, %v52
    %v440 = vsel %vm418, %v439, -inf
    %v441 = vrot.slane %v440, 4
    %v442 = vmax.f32 %v440, %v441
    %v443 = vrot.slane %v442, 2
    %v444 = vmax.f32 %v442, %v443
    %v445 = vrot.slane %v444, 1
    %v446 = vmax.f32 %v444, %v445
    %v447 = vsub.f32 %v439, %v446
    %v448 = vmul.f32 %v447, 1.442695
    %v449 = vpow.pop %v448
    %v450 = vsel %vm418, %v449, 0.0
    %v451 = vrot.slane %v450, 4
    %v452 = vadd.f32 %v450, %v451
    %v453 = vrot.slane %v452, 2
    %v454 = vadd.f32 %v452, %v453
    %v455 = vrot.slane %v454, 1
    %v456 = vadd.f32 %v454, %v455
    %v457 = vlog2.pop %v456
    %v458 = vmul.f32 %v457, 0.6931472
    %v459 = vadd.f32 %v446, %v458
    %vm460 = vcmp.gt.s32.totalorder %v43, 0
    %v461 = vsel %vm460, 1, 0
    %v462 = vcvt.s32.f32 %v461
    %v463 = vmul.f32 %v459, %v462
    %vm464 = vcmask 57344
    %v465 = vsel %vm464, %v463, 0.0
    %466 = vadd.xlane.f32.xlu0 %v465
    %v467 = vpop.xlane.xlu0 %466
    %v468 = vsub.f32 %v467, %v438
    %v469 = vlaneseq
    %v470 = vshrl.u32 %v469, 7
    %v471 = vsub.s32 0, %v470
    %v472 = vrot.slane %v468, %v471
    %473 = vst [vmem:[#allocation7] sm:$0xff] %v472
    // Predicated region
    $region41: #{tpu_custom_call.1} parent=1 // pred_check
      _
    $region42: #{tpu_custom_call.1} parent=1 // pred_check_branch
      %475 = sbr.rel (0) target = $region44
    $region43: #{tpu_custom_call.1} parent=1 // pred_region
      %s477 = ssub.s32 128, 128
      %478 = vsyncadd [#allocation6], %s477
      %s480 = sshll.u32 [#allocation7], 4
      %s481 = int_to_ptr.vmem [resolvable:$true] %s480
      %483 = dma.vmem_to_hbm [thread:$0]  %s481, 128, %s8, [#allocation6]
    $region44: #{tpu_custom_call.1} parent=1 // pred_fallthru
      _
    // Predicated region
    $region45: #{tpu_custom_call.1} parent=1 // pred_check
      _
    $region46: #{tpu_custom_call.1} parent=1 // pred_check_branch
      %485 = sbr.rel (0) target = $region48
    $region47: #{tpu_custom_call.1} parent=1 // pred_region
      %486 = dma.done [#allocation6], 128
    $region48: #{tpu_custom_call.1} parent=1 // pred_fallthru
      _
    %487 = vsyncpa [#allocation5], 1
    %488 = vsyncpa [#allocation6], 1

</llo_original>
